<compile_context>
chip_gen: v7x
topology: tpu7x:2x2x1
jax: 0.10.0
libtpu: 0.0.40
codegen_flags: <defaults>
</compile_context>

<pallas_src>
import math

import jax
import jax.numpy as jnp
from jax import lax
from jax.experimental import pallas as pl
from jax.experimental.pallas import tpu as pltpu

_EPS = 1e-5
# Safe on every generation (== v5e default scoped VMEM, below v6e/v7x defaults) and
# comfortably above the worst-case footprint of either kernel (~8 MiB).
_VMEM_LIMIT_BYTES = 16 * 1024 * 1024


def _round_up(x, m):
    return ((x + m - 1) // m) * m


def _choose_tile(n, *, unit, max_tile, min_steps=8, min_tile=512):
    """Pick a tile along a dim of extent `n`.

    - multiple of `unit` (8 for sublanes, 128 for lanes),
    - <= max_tile (VMEM budget, incl. v5e's 16 MiB default scoped VMEM),
    - large enough for DMA efficiency (>= min_tile when possible),
    - small enough to give >= min_steps grid steps when n is large, so the
      "parallel" grid axis actually shards across v7x's 2 TensorCores.
    """
    t = min(max_tile, _round_up(n, unit))
    if n >= min_steps * min_tile:
        t = min(t, max(_round_up(pl.cdiv(n, min_steps), unit), min_tile))
    return max(t, unit)


# ---------------------------------------------------------------------------
# Channels-last kernel (module-faithful interface: x (..., C), normalize last dim)
# ---------------------------------------------------------------------------
def _bf_layernorm_cl_kernel(x_ref, w_ref, o_ref):
    # x_ref: (TM, C) rows, w_ref: (1, C), o_ref: (TM, C)
    x = x_ref[...].astype(jnp.float32)
    w = w_ref[...].astype(jnp.float32)

    mu = jnp.mean(x, axis=-1, keepdims=True)                       # (TM, 1)  XLU
    var = jnp.mean(jnp.square(x - mu), axis=-1, keepdims=True)     # biased variance
    inv = lax.rsqrt(var + _EPS)                                    # EUP rsqrt

    # BiasFree: scale the *uncentered* x, exactly like the PyTorch module.
    o_ref[...] = (x * inv * w).astype(o_ref.dtype)


def biasfree_layernorm(x, weight, *, max_rows_per_tile=4096):
    """Module-faithful: x (..., C), weight (C,). Returns same shape/dtype as x."""
    orig_shape = x.shape
    C = orig_shape[-1]
    M = math.prod(orig_shape[:-1]) if len(orig_shape) > 1 else 1

    x2 = x.reshape(M, C)
    w2 = weight.reshape(1, C)

    tm = _choose_tile(M, unit=8, max_tile=max_rows_per_tile)
    grid = (pl.cdiv(M, tm),)   # partial last block: OOB writes masked, no pad/slice

    out = pl.pallas_call(
        _bf_layernorm_cl_kernel,
        out_shape=jax.ShapeDtypeStruct((M, C), x.dtype),
        grid_spec=pltpu.PrefetchScalarGridSpec(
            num_scalar_prefetch=0,
            grid=grid,
            in_specs=[
                pl.BlockSpec((tm, C), lambda i: (i, 0)),   # row tile of x
                pl.BlockSpec((1, C), lambda i: (0, 0)),    # resident weight block
            ],
            out_specs=pl.BlockSpec((tm, C), lambda i: (i, 0)),
        ),
        compiler_params=pltpu.CompilerParams(
            dimension_semantics=("parallel",),
            vmem_limit_bytes=_VMEM_LIMIT_BYTES,
        ),
    )(x2, w2)

    return out.reshape(orig_shape)


# ---------------------------------------------------------------------------
# Channels-first fast path (x (B, C, H, W) / (B, C, L), normalize the channel dim).
# Lane-dense: C on sublanes, spatial on lanes.  Fuses away to_3d/to_4d transposes.
# ---------------------------------------------------------------------------
def _bf_layernorm_cf_kernel(x_ref, w_ref, o_ref):
    # x_ref: (1, C, TL), w_ref: (1, C, 1), o_ref: (1, C, TL)
    x = x_ref[...].astype(jnp.float32)
    w = w_ref[...].astype(jnp.float32)

    mu = jnp.mean(x, axis=1, keepdims=True)                        # (1, 1, TL)  sublane reduce
    var = jnp.mean(jnp.square(x - mu), axis=1, keepdims=True)      # biased variance
    inv = lax.rsqrt(var + _EPS)                                    # EUP rsqrt

    o_ref[...] = (x * inv * w).astype(o_ref.dtype)


def biasfree_layernorm_nchw(x, weight, *, max_cols_per_tile=4096):
    """Fast path: x (B, C, *spatial), weight (C,). Normalizes over the channel axis.

    Numerically identical to to_4d(biasfree_layernorm(to_3d(x)), h, w) in MIMO_SST,
    but without the two transposes (each a full HBM pass) and with lane-dense stores.
    """
    B, C = x.shape[0], x.shape[1]
    L = math.prod(x.shape[2:]) if x.ndim > 2 else 1

    x3 = x.reshape(B, C, L)
    w3 = weight.reshape(1, C, 1)

    tl = _choose_tile(L, unit=128, max_tile=max_cols_per_tile)
    grid = (B, pl.cdiv(L, tl))   # partial last lane-block masked by Pallas

    out = pl.pallas_call(
        _bf_layernorm_cf_kernel,
        out_shape=jax.ShapeDtypeStruct((B, C, L), x.dtype),
        grid_spec=pltpu.PrefetchScalarGridSpec(
            num_scalar_prefetch=0,
            grid=grid,
            in_specs=[
                pl.BlockSpec((1, C, tl), lambda b, j: (b, 0, j)),  # lane-dense x tile
                pl.BlockSpec((1, C, 1), lambda b, j: (0, 0, 0)),   # resident weight
            ],
            out_specs=pl.BlockSpec((1, C, tl), lambda b, j: (b, 0, j)),
        ),
        compiler_params=pltpu.CompilerParams(
            dimension_semantics=("parallel", "parallel"),
            vmem_limit_bytes=_VMEM_LIMIT_BYTES,
        ),
    )(x3, w3)

    return out.reshape(x.shape)


def _reference(x, w):
    var = jnp.var(x, axis=-1, keepdims=True)            # ddof=0 == unbiased=False
    return x / jnp.sqrt(var + _EPS) * w


if __name__ == "__main__":
    key = jax.random.PRNGKey(0)
    kx, kw = jax.random.split(key)

    # Shapes consistent with MIMO_SST usage: LayerNorm over C=48 on (B, H*W, C).
    B, H, W, C = 2, 16, 16, 48
    x_cl = jax.random.normal(kx, (B, H * W, C), dtype=jnp.float32)
    # Module initializes weight to ones; perturb it so the test is non-trivial.
    w = jnp.ones((C,), jnp.float32) + 0.1 * jax.random.normal(kw, (C,), jnp.float32)

    # 1) Module-faithful channels-last path.
    out_cl = jax.block_until_ready(biasfree_layernorm(x_cl, w))
    ref_cl = _reference(x_cl, w)
    assert out_cl.shape == x_cl.shape and out_cl.dtype == x_cl.dtype
    assert jnp.allclose(out_cl, ref_cl, atol=1e-4, rtol=1e-4)

    # 2) Channels-first fast path on the model's native (B, C, H, W) layout.
    x_cf = jnp.transpose(x_cl.reshape(B, H, W, C), (0, 3, 1, 2))
    out_cf = jax.block_until_ready(biasfree_layernorm_nchw(x_cf, w))
    ref_cf = jnp.transpose(ref_cl.reshape(B, H, W, C), (0, 3, 1, 2))
    assert out_cf.shape == x_cf.shape and out_cf.dtype == x_cf.dtype
    assert jnp.allclose(out_cf, ref_cf, atol=1e-4, rtol=1e-4)

    print("KERNEL_OK")
</pallas_src>

<mosaic_0001>
module attributes {stable_mosaic.version = 11 : i64} {
  func.func @_bf_layernorm_cl_kernel(%arg0: i32, %arg1: memref<512x48xf32, #tpu.memory_space<vmem>>, %arg2: memref<1x48xf32, #tpu.memory_space<vmem>>, %arg3: memref<512x48xf32, #tpu.memory_space<vmem>>) attributes {dimension_semantics = [#tpu.dimension_semantics<parallel>], iteration_bounds = array<i64: 1>, scalar_prefetch = 0 : i64, scratch_operands = 0 : i64, tpu.core_type = #tpu.core_type<tc>, window_params = [{transform_indices = @transform_0, window_bounds = array<i64: 512, 48>}, {pipeline_mode = #tpu.pipeline_mode<synchronous>, transform_indices = @transform_1, window_bounds = array<i64: 1, 48>}, {transform_indices = @transform_2, window_bounds = array<i64: 512, 48>}]} {
    %c0 = arith.constant 0 : index
    %c0_0 = arith.constant 0 : index
    %0 = vector.load %arg1[%c0, %c0_0] : memref<512x48xf32, #tpu.memory_space<vmem>>, vector<512x48xf32>
    %c0_1 = arith.constant 0 : index
    %c0_2 = arith.constant 0 : index
    %1 = vector.load %arg2[%c0_1, %c0_2] : memref<1x48xf32, #tpu.memory_space<vmem>>, vector<1x48xf32>
    %cst = arith.constant dense<0.000000e+00> : vector<512xf32>
    %2 = vector.multi_reduction <add>, %0, %cst [1] : vector<512x48xf32> to vector<512xf32>
    %3 = vector.shape_cast %2 : vector<512xf32> to vector<512x1xf32>
    %cst_3 = arith.constant 4.800000e+01 : f32
    %4 = vector.broadcast %cst_3 : f32 to vector<512x1xf32>
    %5 = arith.divf %3, %4 : vector<512x1xf32>
    %6 = vector.broadcast %5 : vector<512x1xf32> to vector<512x48xf32>
    %7 = arith.subf %0, %6 : vector<512x48xf32>
    %8 = arith.mulf %7, %7 : vector<512x48xf32>
    %cst_4 = arith.constant dense<0.000000e+00> : vector<512xf32>
    %9 = vector.multi_reduction <add>, %8, %cst_4 [1] : vector<512x48xf32> to vector<512xf32>
    %10 = vector.shape_cast %9 : vector<512xf32> to vector<512x1xf32>
    %cst_5 = arith.constant 4.800000e+01 : f32
    %11 = vector.broadcast %cst_5 : f32 to vector<512x1xf32>
    %12 = arith.divf %10, %11 : vector<512x1xf32>
    %cst_6 = arith.constant 9.99999974E-6 : f32
    %13 = vector.broadcast %cst_6 : f32 to vector<512x1xf32>
    %14 = arith.addf %12, %13 : vector<512x1xf32>
    %15 = math.rsqrt %14 : vector<512x1xf32>
    %16 = vector.broadcast %15 : vector<512x1xf32> to vector<512x48xf32>
    %17 = arith.mulf %0, %16 : vector<512x48xf32>
    %18 = vector.broadcast %1 : vector<1x48xf32> to vector<512x48xf32>
    %19 = arith.mulf %17, %18 : vector<512x48xf32>
    %c0_7 = arith.constant 0 : index
    %c0_8 = arith.constant 0 : index
    %20 = vector.load %arg3[%c0_7, %c0_8] : memref<512x48xf32, #tpu.memory_space<vmem>>, vector<512x48xf32>
    tpu.vector_store %arg3[%c0_7, %c0_8], %19 {strides = array<i32>} : memref<512x48xf32, #tpu.memory_space<vmem>>, vector<512x48xf32>,
    return
  }
  func.func @transform_0(%arg0: i32) -> (i32, i32) {
    %c0_i32 = arith.constant 0 : i32
    %c0_i32_0 = arith.constant 0 : i32
    return %arg0, %c0_i32 : i32, i32
  }
  func.func @transform_1(%arg0: i32) -> (i32, i32) {
    %c0_i32 = arith.constant 0 : i32
    %c0_i32_0 = arith.constant 0 : i32
    %c0_i32_1 = arith.constant 0 : i32
    return %c0_i32, %c0_i32_0 : i32, i32
  }
  func.func @transform_2(%arg0: i32) -> (i32, i32) {
    %c0_i32 = arith.constant 0 : i32
    %c0_i32_0 = arith.constant 0 : i32
    return %arg0, %c0_i32 : i32, i32
  }
}

</mosaic_0001>

<llo_original>
// kernel: tpu_custom_call.1
$region0: #{tpu_custom_call.1}
  #allocation0 [shape = 'u32[]', space=smem, size = 0x4, offset = 0x4, fixed_abs, tag = 'smem constant byte address 0x4 - core index']
  #allocation1 [shape = 'u32[144,128]{1,0:T(1,128)}', space=vmem, size = 0x12000, scoped, tag = 'internal scratch']
  %s0 = inlined_call_operand.vmem [shape: f32[512,48], index: 0, kind: input, shape index: {}]
  %s1 = inlined_call_operand.vmem [shape: f32[1,48], index: 1, kind: input, shape index: {}]
  %s2 = inlined_call_operand.vmem [shape: f32[512,48], index: 2, kind: output, shape index: {}]
  %s3 = sld [smem:[#allocation0]]
  $region18: #{tpu_custom_call.1} parent=0
    _
  %s5 = ssub.s32 1, %s3
  %s6 = scalar_select 0, %s5, %s3
  // Predicated region
  $region2: #{tpu_custom_call.1} parent=0 // pred_check
    _
  $region3: #{tpu_custom_call.1} parent=0 // pred_check_branch
    %8 = sbr.rel (0) target = $region5
  $region4: #{tpu_custom_call.1} parent=0 // pred_region
    _
  $region5: #{tpu_custom_call.1} parent=0 // pred_fallthru
    _
  // Predicated region
  $region6: #{tpu_custom_call.1} parent=0 // pred_check
    _
  $region7: #{tpu_custom_call.1} parent=0 // pred_check_branch
    %10 = sbr.rel (0) target = $region9
  $region8: #{tpu_custom_call.1} parent=0 // pred_region
    _
  $region9: #{tpu_custom_call.1} parent=0 // pred_fallthru
    _
  %v11 = vld [vmem:[%s0] sm:$0xff]
  %v12 = vld [vmem:[%s0 + $0x8] sm:$0xff]
  %v13 = vld [vmem:[%s0 + $0x10] sm:$0xff]
  %v14 = vld [vmem:[%s0 + $0x18] sm:$0xff]
  %v15 = vld [vmem:[%s0 + $0x20] sm:$0xff]
  %v16 = vld [vmem:[%s0 + $0x28] sm:$0xff]
  %v17 = vld [vmem:[%s0 + $0x30] sm:$0xff]
  %v18 = vld [vmem:[%s0 + $0x38] sm:$0xff]
  %v19 = vld [vmem:[%s0 + $0x40] sm:$0xff]
  %v20 = vld [vmem:[%s0 + $0x48] sm:$0xff]
  %v21 = vld [vmem:[%s0 + $0x50] sm:$0xff]
  %v22 = vld [vmem:[%s0 + $0x58] sm:$0xff]
  %v23 = vld [vmem:[%s0 + $0x60] sm:$0xff]
  %v24 = vld [vmem:[%s0 + $0x68] sm:$0xff]
  %v25 = vld [vmem:[%s0 + $0x70] sm:$0xff]
  %v26 = vld [vmem:[%s0 + $0x78] sm:$0xff]
  %v27 = vld [vmem:[%s0 + $0x80] sm:$0xff]
  %v28 = vld [vmem:[%s0 + $0x88] sm:$0xff]
  %v29 = vld [vmem:[%s0 + $0x90] sm:$0xff]
  %v30 = vld [vmem:[%s0 + $0x98] sm:$0xff]
  %v31 = vld [vmem:[%s0 + $0xa0] sm:$0xff]
  %v32 = vld [vmem:[%s0 + $0xa8] sm:$0xff]
  %v33 = vld [vmem:[%s0 + $0xb0] sm:$0xff]
  %v34 = vld [vmem:[%s0 + $0xb8] sm:$0xff]
  %v35 = vld [vmem:[%s0 + $0xc0] sm:$0xff]
  %v36 = vld [vmem:[%s0 + $0xc8] sm:$0xff]
  %v37 = vld [vmem:[%s0 + $0xd0] sm:$0xff]
  %v38 = vld [vmem:[%s0 + $0xd8] sm:$0xff]
  %v39 = vld [vmem:[%s0 + $0xe0] sm:$0xff]
  %v40 = vld [vmem:[%s0 + $0xe8] sm:$0xff]
  %v41 = vld [vmem:[%s0 + $0xf0] sm:$0xff]
  %v42 = vld [vmem:[%s0 + $0xf8] sm:$0xff]
  %v43 = vld [vmem:[%s0 + $0x100] sm:$0xff]
  %v44 = vld [vmem:[%s0 + $0x108] sm:$0xff]
  %v45 = vld [vmem:[%s0 + $0x110] sm:$0xff]
  %v46 = vld [vmem:[%s0 + $0x118] sm:$0xff]
  %v47 = vld [vmem:[%s0 + $0x120] sm:$0xff]
  %v48 = vld [vmem:[%s0 + $0x128] sm:$0xff]
  %v49 = vld [vmem:[%s0 + $0x130] sm:$0xff]
  %v50 = vld [vmem:[%s0 + $0x138] sm:$0xff]
  %v51 = vld [vmem:[%s0 + $0x140] sm:$0xff]
  %v52 = vld [vmem:[%s0 + $0x148] sm:$0xff]
  %v53 = vld [vmem:[%s0 + $0x150] sm:$0xff]
  %v54 = vld [vmem:[%s0 + $0x158] sm:$0xff]
  %v55 = vld [vmem:[%s0 + $0x160] sm:$0xff]
  %v56 = vld [vmem:[%s0 + $0x168] sm:$0xff]
  %v57 = vld [vmem:[%s0 + $0x170] sm:$0xff]
  %v58 = vld [vmem:[%s0 + $0x178] sm:$0xff]
  %v59 = vld [vmem:[%s0 + $0x180] sm:$0xff]
  %v60 = vld [vmem:[%s0 + $0x188] sm:$0xff]
  %v61 = vld [vmem:[%s0 + $0x190] sm:$0xff]
  %v62 = vld [vmem:[%s0 + $0x198] sm:$0xff]
  %v63 = vld [vmem:[%s0 + $0x1a0] sm:$0xff]
  %v64 = vld [vmem:[%s0 + $0x1a8] sm:$0xff]
  %v65 = vld [vmem:[%s0 + $0x1b0] sm:$0xff]
  %v66 = vld [vmem:[%s0 + $0x1b8] sm:$0xff]
  %v67 = vld [vmem:[%s0 + $0x1c0] sm:$0xff]
  %v68 = vld [vmem:[%s0 + $0x1c8] sm:$0xff]
  %v69 = vld [vmem:[%s0 + $0x1d0] sm:$0xff]
  %v70 = vld [vmem:[%s0 + $0x1d8] sm:$0xff]
  %v71 = vld [vmem:[%s0 + $0x1e0] sm:$0xff]
  %v72 = vld [vmem:[%s0 + $0x1e8] sm:$0xff]
  %v73 = vld [vmem:[%s0 + $0x1f0] sm:$0xff]
  %v74 = vld [vmem:[%s0 + $0x1f8] sm:$0xff]
  %v75 = vld [vmem:[%s1] sm:$0x1]
  %vm76 = vcmask 392192
  %v77 = vsel %vm76, %v11, 0.0
  %78 = vadd.xlane.f32.xlu0 %v77
  %v79 = vpop.xlane.xlu0 %78
  %v80 = vsel %vm76, %v12, 0.0
  %81 = vadd.xlane.f32.xlu0 %v80
  %v82 = vpop.xlane.xlu0 %81
  %v83 = vsel %vm76, %v13, 0.0
  %84 = vadd.xlane.f32.xlu0 %v83
  %v85 = vpop.xlane.xlu0 %84
  %v86 = vsel %vm76, %v14, 0.0
  %87 = vadd.xlane.f32.xlu0 %v86
  %v88 = vpop.xlane.xlu0 %87
  %v89 = vsel %vm76, %v15, 0.0
  %90 = vadd.xlane.f32.xlu0 %v89
  %v91 = vpop.xlane.xlu0 %90
  %v92 = vsel %vm76, %v16, 0.0
  %93 = vadd.xlane.f32.xlu0 %v92
  %v94 = vpop.xlane.xlu0 %93
  %v95 = vsel %vm76, %v17, 0.0
  %96 = vadd.xlane.f32.xlu0 %v95
  %v97 = vpop.xlane.xlu0 %96
  %v98 = vsel %vm76, %v18, 0.0
  %99 = vadd.xlane.f32.xlu0 %v98
  %v100 = vpop.xlane.xlu0 %99
  %v101 = vsel %vm76, %v19, 0.0
  %102 = vadd.xlane.f32.xlu0 %v101
  %v103 = vpop.xlane.xlu0 %102
  %v104 = vsel %vm76, %v20, 0.0
  %105 = vadd.xlane.f32.xlu0 %v104
  %v106 = vpop.xlane.xlu0 %105
  %v107 = vsel %vm76, %v21, 0.0
  %108 = vadd.xlane.f32.xlu0 %v107
  %v109 = vpop.xlane.xlu0 %108
  %v110 = vsel %vm76, %v22, 0.0
  %111 = vadd.xlane.f32.xlu0 %v110
  %v112 = vpop.xlane.xlu0 %111
  %v113 = vsel %vm76, %v23, 0.0
  %114 = vadd.xlane.f32.xlu0 %v113
  %v115 = vpop.xlane.xlu0 %114
  %v116 = vsel %vm76, %v24, 0.0
  %117 = vadd.xlane.f32.xlu0 %v116
  %v118 = vpop.xlane.xlu0 %117
  %v119 = vsel %vm76, %v25, 0.0
  %120 = vadd.xlane.f32.xlu0 %v119
  %v121 = vpop.xlane.xlu0 %120
  %v122 = vsel %vm76, %v26, 0.0
  %123 = vadd.xlane.f32.xlu0 %v122
  %v124 = vpop.xlane.xlu0 %123
  %v125 = vsel %vm76, %v27, 0.0
  %126 = vadd.xlane.f32.xlu0 %v125
  %v127 = vpop.xlane.xlu0 %126
  %v128 = vsel %vm76, %v28, 0.0
  %129 = vadd.xlane.f32.xlu0 %v128
  %v130 = vpop.xlane.xlu0 %129
  %v131 = vsel %vm76, %v29, 0.0
  %132 = vadd.xlane.f32.xlu0 %v131
  %v133 = vpop.xlane.xlu0 %132
  %v134 = vsel %vm76, %v30, 0.0
  %135 = vadd.xlane.f32.xlu0 %v134
  %v136 = vpop.xlane.xlu0 %135
  %v137 = vsel %vm76, %v31, 0.0
  %138 = vadd.xlane.f32.xlu0 %v137
  %v139 = vpop.xlane.xlu0 %138
  %v140 = vsel %vm76, %v32, 0.0
  %141 = vadd.xlane.f32.xlu0 %v140
  %v142 = vpop.xlane.xlu0 %141
  %v143 = vsel %vm76, %v33, 0.0
  %144 = vadd.xlane.f32.xlu0 %v143
  %v145 = vpop.xlane.xlu0 %144
  %v146 = vsel %vm76, %v34, 0.0
  %147 = vadd.xlane.f32.xlu0 %v146
  %v148 = vpop.xlane.xlu0 %147
  %v149 = vsel %vm76, %v35, 0.0
  %150 = vadd.xlane.f32.xlu0 %v149
  %v151 = vpop.xlane.xlu0 %150
  %v152 = vsel %vm76, %v36, 0.0
  %153 = vadd.xlane.f32.xlu0 %v152
  %v154 = vpop.xlane.xlu0 %153
  %v155 = vsel %vm76, %v37, 0.0
  %156 = vadd.xlane.f32.xlu0 %v155
  %v157 = vpop.xlane.xlu0 %156
  %v158 = vsel %vm76, %v38, 0.0
  %159 = vadd.xlane.f32.xlu0 %v158
  %v160 = vpop.xlane.xlu0 %159
  %v161 = vsel %vm76, %v39, 0.0
  %162 = vadd.xlane.f32.xlu0 %v161
  %v163 = vpop.xlane.xlu0 %162
  %v164 = vsel %vm76, %v40, 0.0
  %165 = vadd.xlane.f32.xlu0 %v164
  %v166 = vpop.xlane.xlu0 %165
  %v167 = vsel %vm76, %v41, 0.0
  %168 = vadd.xlane.f32.xlu0 %v167
  %v169 = vpop.xlane.xlu0 %168
  %v170 = vsel %vm76, %v42, 0.0
  %171 = vadd.xlane.f32.xlu0 %v170
  %v172 = vpop.xlane.xlu0 %171
  %v173 = vsel %vm76, %v43, 0.0
  %174 = vadd.xlane.f32.xlu0 %v173
  %v175 = vpop.xlane.xlu0 %174
  %v176 = vsel %vm76, %v44, 0.0
  %177 = vadd.xlane.f32.xlu0 %v176
  %v178 = vpop.xlane.xlu0 %177
  %v179 = vsel %vm76, %v45, 0.0
  %180 = vadd.xlane.f32.xlu0 %v179
  %v181 = vpop.xlane.xlu0 %180
  %v182 = vsel %vm76, %v46, 0.0
  %183 = vadd.xlane.f32.xlu0 %v182
  %v184 = vpop.xlane.xlu0 %183
  %v185 = vsel %vm76, %v47, 0.0
  %186 = vadd.xlane.f32.xlu0 %v185
  %v187 = vpop.xlane.xlu0 %186
  %v188 = vsel %vm76, %v48, 0.0
  %189 = vadd.xlane.f32.xlu0 %v188
  %v190 = vpop.xlane.xlu0 %189
  %v191 = vsel %vm76, %v49, 0.0
  %192 = vadd.xlane.f32.xlu0 %v191
  %v193 = vpop.xlane.xlu0 %192
  %v194 = vsel %vm76, %v50, 0.0
  %195 = vadd.xlane.f32.xlu0 %v194
  %v196 = vpop.xlane.xlu0 %195
  %v197 = vsel %vm76, %v51, 0.0
  %198 = vadd.xlane.f32.xlu0 %v197
  %v199 = vpop.xlane.xlu0 %198
  %v200 = vsel %vm76, %v52, 0.0
  %201 = vadd.xlane.f32.xlu0 %v200
  %v202 = vpop.xlane.xlu0 %201
  %v203 = vsel %vm76, %v53, 0.0
  %204 = vadd.xlane.f32.xlu0 %v203
  %v205 = vpop.xlane.xlu0 %204
  %v206 = vsel %vm76, %v54, 0.0
  %207 = vadd.xlane.f32.xlu0 %v206
  %v208 = vpop.xlane.xlu0 %207
  %v209 = vsel %vm76, %v55, 0.0
  %210 = vadd.xlane.f32.xlu0 %v209
  %v211 = vpop.xlane.xlu0 %210
  %v212 = vsel %vm76, %v56, 0.0
  %213 = vadd.xlane.f32.xlu0 %v212
  %v214 = vpop.xlane.xlu0 %213
  %v215 = vsel %vm76, %v57, 0.0
  %216 = vadd.xlane.f32.xlu0 %v215
  %v217 = vpop.xlane.xlu0 %216
  %v218 = vsel %vm76, %v58, 0.0
  %219 = vadd.xlane.f32.xlu0 %v218
  %v220 = vpop.xlane.xlu0 %219
  %v221 = vsel %vm76, %v59, 0.0
  %222 = vadd.xlane.f32.xlu0 %v221
  %v223 = vpop.xlane.xlu0 %222
  %v224 = vsel %vm76, %v60, 0.0
  %225 = vadd.xlane.f32.xlu0 %v224
  %v226 = vpop.xlane.xlu0 %225
  %v227 = vsel %vm76, %v61, 0.0
  %228 = vadd.xlane.f32.xlu0 %v227
  %v229 = vpop.xlane.xlu0 %228
  %v230 = vsel %vm76, %v62, 0.0
  %231 = vadd.xlane.f32.xlu0 %v230
  %v232 = vpop.xlane.xlu0 %231
  %v233 = vsel %vm76, %v63, 0.0
  %234 = vadd.xlane.f32.xlu0 %v233
  %v235 = vpop.xlane.xlu0 %234
  %v236 = vsel %vm76, %v64, 0.0
  %237 = vadd.xlane.f32.xlu0 %v236
  %v238 = vpop.xlane.xlu0 %237
  %v239 = vsel %vm76, %v65, 0.0
  %240 = vadd.xlane.f32.xlu0 %v239
  %v241 = vpop.xlane.xlu0 %240
  %v242 = vsel %vm76, %v66, 0.0
  %243 = vadd.xlane.f32.xlu0 %v242
  %v244 = vpop.xlane.xlu0 %243
  %v245 = vsel %vm76, %v67, 0.0
  %246 = vadd.xlane.f32.xlu0 %v245
  %v247 = vpop.xlane.xlu0 %246
  %v248 = vsel %vm76, %v68, 0.0
  %249 = vadd.xlane.f32.xlu0 %v248
  %v250 = vpop.xlane.xlu0 %249
  %v251 = vsel %vm76, %v69, 0.0
  %252 = vadd.xlane.f32.xlu0 %v251
  %v253 = vpop.xlane.xlu0 %252
  %v254 = vsel %vm76, %v70, 0.0
  %255 = vadd.xlane.f32.xlu0 %v254
  %v256 = vpop.xlane.xlu0 %255
  %v257 = vsel %vm76, %v71, 0.0
  %258 = vadd.xlane.f32.xlu0 %v257
  %v259 = vpop.xlane.xlu0 %258
  %v260 = vsel %vm76, %v72, 0.0
  %261 = vadd.xlane.f32.xlu0 %v260
  %v262 = vpop.xlane.xlu0 %261
  %v263 = vsel %vm76, %v73, 0.0
  %264 = vadd.xlane.f32.xlu0 %v263
  %v265 = vpop.xlane.xlu0 %264
  %v266 = vsel %vm76, %v74, 0.0
  %267 = vadd.xlane.f32.xlu0 %v266
  %v268 = vpop.xlane.xlu0 %267
  %v269 = vrcp.pop 48.0
  %v270 = vmul.f32 %v79, %v269
  %v271 = vmul.f32 %v82, %v269
  %v272 = vmul.f32 %v85, %v269
  %v273 = vmul.f32 %v88, %v269
  %v274 = vmul.f32 %v91, %v269
  %v275 = vmul.f32 %v94, %v269
  %v276 = vmul.f32 %v97, %v269
  %v277 = vmul.f32 %v100, %v269
  %v278 = vmul.f32 %v103, %v269
  %v279 = vmul.f32 %v106, %v269
  %v280 = vmul.f32 %v109, %v269
  %v281 = vmul.f32 %v112, %v269
  %v282 = vmul.f32 %v115, %v269
  %v283 = vmul.f32 %v118, %v269
  %v284 = vmul.f32 %v121, %v269
  %v285 = vmul.f32 %v124, %v269
  %v286 = vmul.f32 %v127, %v269
  %v287 = vmul.f32 %v130, %v269
  %v288 = vmul.f32 %v133, %v269
  %v289 = vmul.f32 %v136, %v269
  %v290 = vmul.f32 %v139, %v269
  %v291 = vmul.f32 %v142, %v269
  %v292 = vmul.f32 %v145, %v269
  %v293 = vmul.f32 %v148, %v269
  %v294 = vmul.f32 %v151, %v269
  %v295 = vmul.f32 %v154, %v269
  %v296 = vmul.f32 %v157, %v269
  %v297 = vmul.f32 %v160, %v269
  %v298 = vmul.f32 %v163, %v269
  %v299 = vmul.f32 %v166, %v269
  %v300 = vmul.f32 %v169, %v269
  %v301 = vmul.f32 %v172, %v269
  %v302 = vmul.f32 %v175, %v269
  %v303 = vmul.f32 %v178, %v269
  %v304 = vmul.f32 %v181, %v269
  %v305 = vmul.f32 %v184, %v269
  %v306 = vmul.f32 %v187, %v269
  %v307 = vmul.f32 %v190, %v269
  %v308 = vmul.f32 %v193, %v269
  %v309 = vmul.f32 %v196, %v269
  %v310 = vmul.f32 %v199, %v269
  %v311 = vmul.f32 %v202, %v269
  %v312 = vmul.f32 %v205, %v269
  %v313 = vmul.f32 %v208, %v269
  %v314 = vmul.f32 %v211, %v269
  %v315 = vmul.f32 %v214, %v269
  %v316 = vmul.f32 %v217, %v269
  %v317 = vmul.f32 %v220, %v269
  %v318 = vmul.f32 %v223, %v269
  %v319 = vmul.f32 %v226, %v269
  %v320 = vmul.f32 %v229, %v269
  %v321 = vmul.f32 %v232, %v269
  %v322 = vmul.f32 %v235, %v269
  %v323 = vmul.f32 %v238, %v269
  %v324 = vmul.f32 %v241, %v269
  %v325 = vmul.f32 %v244, %v269
  %v326 = vmul.f32 %v247, %v269
  %v327 = vmul.f32 %v250, %v269
  %v328 = vmul.f32 %v253, %v269
  %v329 = vmul.f32 %v256, %v269
  %v330 = vmul.f32 %v259, %v269
  %v331 = vmul.f32 %v262, %v269
  %v332 = vmul.f32 %v265, %v269
  %v333 = vmul.f32 %v268, %v269
  %v334 = vsub.f32 %v11, %v270
  %v335 = vsub.f32 %v12, %v271
  %v336 = vsub.f32 %v13, %v272
  %v337 = vsub.f32 %v14, %v273
  %v338 = vsub.f32 %v15, %v274
  %v339 = vsub.f32 %v16, %v275
  %v340 = vsub.f32 %v17, %v276
  %v341 = vsub.f32 %v18, %v277
  %v342 = vsub.f32 %v19, %v278
  %v343 = vsub.f32 %v20, %v279
  %v344 = vsub.f32 %v21, %v280
  %v345 = vsub.f32 %v22, %v281
  %v346 = vsub.f32 %v23, %v282
  %v347 = vsub.f32 %v24, %v283
  %v348 = vsub.f32 %v25, %v284
  %v349 = vsub.f32 %v26, %v285
  %v350 = vsub.f32 %v27, %v286
  %v351 = vsub.f32 %v28, %v287
  %v352 = vsub.f32 %v29, %v288
  %v353 = vsub.f32 %v30, %v289
  %v354 = vsub.f32 %v31, %v290
  %v355 = vsub.f32 %v32, %v291
  %v356 = vsub.f32 %v33, %v292
  %v357 = vsub.f32 %v34, %v293
  %v358 = vsub.f32 %v35, %v294
  %v359 = vsub.f32 %v36, %v295
  %v360 = vsub.f32 %v37, %v296
  %v361 = vsub.f32 %v38, %v297
  %v362 = vsub.f32 %v39, %v298
  %v363 = vsub.f32 %v40, %v299
  %v364 = vsub.f32 %v41, %v300
  %v365 = vsub.f32 %v42, %v301
  %v366 = vsub.f32 %v43, %v302
  %v367 = vsub.f32 %v44, %v303
  %v368 = vsub.f32 %v45, %v304
  %v369 = vsub.f32 %v46, %v305
  %v370 = vsub.f32 %v47, %v306
  %v371 = vsub.f32 %v48, %v307
  %v372 = vsub.f32 %v49, %v308
  %v373 = vsub.f32 %v50, %v309
  %v374 = vsub.f32 %v51, %v310
  %v375 = vsub.f32 %v52, %v311
  %v376 = vsub.f32 %v53, %v312
  %v377 = vsub.f32 %v54, %v313
  %v378 = vsub.f32 %v55, %v314
  %v379 = vsub.f32 %v56, %v315
  %v380 = vsub.f32 %v57, %v316
  %v381 = vsub.f32 %v58, %v317
  %v382 = vsub.f32 %v59, %v318
  %v383 = vsub.f32 %v60, %v319
  %v384 = vsub.f32 %v61, %v320
  %v385 = vsub.f32 %v62, %v321
  %v386 = vsub.f32 %v63, %v322
  %v387 = vsub.f32 %v64, %v323
  %v388 = vsub.f32 %v65, %v324
  %v389 = vsub.f32 %v66, %v325
  %v390 = vsub.f32 %v67, %v326
  %v391 = vsub.f32 %v68, %v327
  %v392 = vsub.f32 %v69, %v328
  %v393 = vsub.f32 %v70, %v329
  %v394 = vsub.f32 %v71, %v330
  %v395 = vsub.f32 %v72, %v331
  %v396 = vsub.f32 %v73, %v332
  %v397 = vsub.f32 %v74, %v333
  %v398 = vmul.f32 %v334, %v334
  %v399 = vmul.f32 %v335, %v335
  %v400 = vmul.f32 %v336, %v336
  %v401 = vmul.f32 %v337, %v337
  %v402 = vmul.f32 %v338, %v338
  %v403 = vmul.f32 %v339, %v339
  %v404 = vmul.f32 %v340, %v340
  %v405 = vmul.f32 %v341, %v341
  %v406 = vmul.f32 %v342, %v342
  %v407 = vmul.f32 %v343, %v343
  %v408 = vmul.f32 %v344, %v344
  %v409 = vmul.f32 %v345, %v345
  %v410 = vmul.f32 %v346, %v346
  %v411 = vmul.f32 %v347, %v347
  %v412 = vmul.f32 %v348, %v348
  %v413 = vmul.f32 %v349, %v349
  %v414 = vmul.f32 %v350, %v350
  %v415 = vmul.f32 %v351, %v351
  %v416 = vmul.f32 %v352, %v352
  %v417 = vmul.f32 %v353, %v353
  %v418 = vmul.f32 %v354, %v354
  %v419 = vmul.f32 %v355, %v355
  %v420 = vmul.f32 %v356, %v356
  %v421 = vmul.f32 %v357, %v357
  %v422 = vmul.f32 %v358, %v358
  %v423 = vmul.f32 %v359, %v359
  %v424 = vmul.f32 %v360, %v360
  %v425 = vmul.f32 %v361, %v361
  %v426 = vmul.f32 %v362, %v362
  %v427 = vmul.f32 %v363, %v363
  %v428 = vmul.f32 %v364, %v364
  %v429 = vmul.f32 %v365, %v365
  %v430 = vmul.f32 %v366, %v366
  %v431 = vmul.f32 %v367, %v367
  %v432 = vmul.f32 %v368, %v368
  %v433 = vmul.f32 %v369, %v369
  %v434 = vmul.f32 %v370, %v370
  %v435 = vmul.f32 %v371, %v371
  %v436 = vmul.f32 %v372, %v372
  %v437 = vmul.f32 %v373, %v373
  %v438 = vmul.f32 %v374, %v374
  %v439 = vmul.f32 %v375, %v375
  %v440 = vmul.f32 %v376, %v376
  %v441 = vmul.f32 %v377, %v377
  %v442 = vmul.f32 %v378, %v378
  %v443 = vmul.f32 %v379, %v379
  %v444 = vmul.f32 %v380, %v380
  %v445 = vmul.f32 %v381, %v381
  %v446 = vmul.f32 %v382, %v382
  %v447 = vmul.f32 %v383, %v383
  %v448 = vmul.f32 %v384, %v384
  %v449 = vmul.f32 %v385, %v385
  %v450 = vmul.f32 %v386, %v386
  %v451 = vmul.f32 %v387, %v387
  %v452 = vmul.f32 %v388, %v388
  %v453 = vmul.f32 %v389, %v389
  %v454 = vmul.f32 %v390, %v390
  %v455 = vmul.f32 %v391, %v391
  %v456 = vmul.f32 %v392, %v392
  %v457 = vmul.f32 %v393, %v393
  %v458 = vmul.f32 %v394, %v394
  %v459 = vmul.f32 %v395, %v395
  %v460 = vmul.f32 %v396, %v396
  %v461 = vmul.f32 %v397, %v397
  %v462 = vsel %vm76, %v398, 0.0
  %463 = vadd.xlane.f32.xlu0 %v462
  %v464 = vpop.xlane.xlu0 %463
  %v465 = vsel %vm76, %v399, 0.0
  %466 = vadd.xlane.f32.xlu0 %v465
  %v467 = vpop.xlane.xlu0 %466
  %v468 = vsel %vm76, %v400, 0.0
  %469 = vadd.xlane.f32.xlu0 %v468
  %v470 = vpop.xlane.xlu0 %469
  %v471 = vsel %vm76, %v401, 0.0
  %472 = vadd.xlane.f32.xlu0 %v471
  %v473 = vpop.xlane.xlu0 %472
  %v474 = vsel %vm76, %v402, 0.0
  %475 = vadd.xlane.f32.xlu0 %v474
  %v476 = vpop.xlane.xlu0 %475
  %v477 = vsel %vm76, %v403, 0.0
  %478 = vadd.xlane.f32.xlu0 %v477
  %v479 = vpop.xlane.xlu0 %478
  %v480 = vsel %vm76, %v404, 0.0
  %481 = vadd.xlane.f32.xlu0 %v480
  %v482 = vpop.xlane.xlu0 %481
  %v483 = vsel %vm76, %v405, 0.0
  %484 = vadd.xlane.f32.xlu0 %v483
  %v485 = vpop.xlane.xlu0 %484
  %v486 = vsel %vm76, %v406, 0.0
  %487 = vadd.xlane.f32.xlu0 %v486
  %v488 = vpop.xlane.xlu0 %487
  %v489 = vsel %vm76, %v407, 0.0
  %490 = vadd.xlane.f32.xlu0 %v489
  %v491 = vpop.xlane.xlu0 %490
  %v492 = vsel %vm76, %v408, 0.0
  %493 = vadd.xlane.f32.xlu0 %v492
  %v494 = vpop.xlane.xlu0 %493
  %v495 = vsel %vm76, %v409, 0.0
  %496 = vadd.xlane.f32.xlu0 %v495
  %v497 = vpop.xlane.xlu0 %496
  %v498 = vsel %vm76, %v410, 0.0
  %499 = vadd.xlane.f32.xlu0 %v498
  %v500 = vpop.xlane.xlu0 %499
  %v501 = vsel %vm76, %v411, 0.0
  %502 = vadd.xlane.f32.xlu0 %v501
  %v503 = vpop.xlane.xlu0 %502
  %v504 = vsel %vm76, %v412, 0.0
  %505 = vadd.xlane.f32.xlu0 %v504
  %v506 = vpop.xlane.xlu0 %505
  %v507 = vsel %vm76, %v413, 0.0
  %508 = vadd.xlane.f32.xlu0 %v507
  %v509 = vpop.xlane.xlu0 %508
  %v510 = vsel %vm76, %v414, 0.0
  %511 = vadd.xlane.f32.xlu0 %v510
  %v512 = vpop.xlane.xlu0 %511
  %v513 = vsel %vm76, %v415, 0.0
  %514 = vadd.xlane.f32.xlu0 %v513
  %v515 = vpop.xlane.xlu0 %514
  %v516 = vsel %vm76, %v416, 0.0
  %517 = vadd.xlane.f32.xlu0 %v516
  %v518 = vpop.xlane.xlu0 %517
  %v519 = vsel %vm76, %v417, 0.0
  %520 = vadd.xlane.f32.xlu0 %v519
  %v521 = vpop.xlane.xlu0 %520
  %v522 = vsel %vm76, %v418, 0.0
  %523 = vadd.xlane.f32.xlu0 %v522
  %v524 = vpop.xlane.xlu0 %523
  %v525 = vsel %vm76, %v419, 0.0
  %526 = vadd.xlane.f32.xlu0 %v525
  %v527 = vpop.xlane.xlu0 %526
  %v528 = vsel %vm76, %v420, 0.0
  %529 = vadd.xlane.f32.xlu0 %v528
  %v530 = vpop.xlane.xlu0 %529
  %v531 = vsel %vm76, %v421, 0.0
  %532 = vadd.xlane.f32.xlu0 %v531
  %v533 = vpop.xlane.xlu0 %532
  %v534 = vsel %vm76, %v422, 0.0
  %535 = vadd.xlane.f32.xlu0 %v534
  %v536 = vpop.xlane.xlu0 %535
  %v537 = vsel %vm76, %v423, 0.0
  %538 = vadd.xlane.f32.xlu0 %v537
  %v539 = vpop.xlane.xlu0 %538
  %v540 = vsel %vm76, %v424, 0.0
  %541 = vadd.xlane.f32.xlu0 %v540
  %v542 = vpop.xlane.xlu0 %541
  %v543 = vsel %vm76, %v425, 0.0
  %544 = vadd.xlane.f32.xlu0 %v543
  %v545 = vpop.xlane.xlu0 %544
  %v546 = vsel %vm76, %v426, 0.0
  %547 = vadd.xlane.f32.xlu0 %v546
  %v548 = vpop.xlane.xlu0 %547
  %v549 = vsel %vm76, %v427, 0.0
  %550 = vadd.xlane.f32.xlu0 %v549
  %v551 = vpop.xlane.xlu0 %550
  %v552 = vsel %vm76, %v428, 0.0
  %553 = vadd.xlane.f32.xlu0 %v552
  %v554 = vpop.xlane.xlu0 %553
  %v555 = vsel %vm76, %v429, 0.0
  %556 = vadd.xlane.f32.xlu0 %v555
  %v557 = vpop.xlane.xlu0 %556
  %v558 = vsel %vm76, %v430, 0.0
  %559 = vadd.xlane.f32.xlu0 %v558
  %v560 = vpop.xlane.xlu0 %559
  %v561 = vsel %vm76, %v431, 0.0
  %562 = vadd.xlane.f32.xlu0 %v561
  %v563 = vpop.xlane.xlu0 %562
  %v564 = vsel %vm76, %v432, 0.0
  %565 = vadd.xlane.f32.xlu0 %v564
  %v566 = vpop.xlane.xlu0 %565
  %v567 = vsel %vm76, %v433, 0.0
  %568 = vadd.xlane.f32.xlu0 %v567
  %v569 = vpop.xlane.xlu0 %568
  %v570 = vsel %vm76, %v434, 0.0
  %571 = vadd.xlane.f32.xlu0 %v570
  %v572 = vpop.xlane.xlu0 %571
  %v573 = vsel %vm76, %v435, 0.0
  %574 = vadd.xlane.f32.xlu0 %v573
  %v575 = vpop.xlane.xlu0 %574
  %v576 = vsel %vm76, %v436, 0.0
  %577 = vadd.xlane.f32.xlu0 %v576
  %v578 = vpop.xlane.xlu0 %577
  %v579 = vsel %vm76, %v437, 0.0
  %580 = vadd.xlane.f32.xlu0 %v579
  %v581 = vpop.xlane.xlu0 %580
  %v582 = vsel %vm76, %v438, 0.0
  %583 = vadd.xlane.f32.xlu0 %v582
  %v584 = vpop.xlane.xlu0 %583
  %v585 = vsel %vm76, %v439, 0.0
  %586 = vadd.xlane.f32.xlu0 %v585
  %v587 = vpop.xlane.xlu0 %586
  %v588 = vsel %vm76, %v440, 0.0
  %589 = vadd.xlane.f32.xlu0 %v588
  %v590 = vpop.xlane.xlu0 %589
  %v591 = vsel %vm76, %v441, 0.0
  %592 = vadd.xlane.f32.xlu0 %v591
  %v593 = vpop.xlane.xlu0 %592
  %v594 = vsel %vm76, %v442, 0.0
  %595 = vadd.xlane.f32.xlu0 %v594
  %v596 = vpop.xlane.xlu0 %595
  %v597 = vsel %vm76, %v443, 0.0
  %598 = vadd.xlane.f32.xlu0 %v597
  %v599 = vpop.xlane.xlu0 %598
  %v600 = vsel %vm76, %v444, 0.0
  %601 = vadd.xlane.f32.xlu0 %v600
  %v602 = vpop.xlane.xlu0 %601
  %v603 = vsel %vm76, %v445, 0.0
  %604 = vadd.xlane.f32.xlu0 %v603
  %v605 = vpop.xlane.xlu0 %604
  %v606 = vsel %vm76, %v446, 0.0
  %607 = vadd.xlane.f32.xlu0 %v606
  %v608 = vpop.xlane.xlu0 %607
  %v609 = vsel %vm76, %v447, 0.0
  %610 = vadd.xlane.f32.xlu0 %v609
  %v611 = vpop.xlane.xlu0 %610
  %v612 = vsel %vm76, %v448, 0.0
  %613 = vadd.xlane.f32.xlu0 %v612
  %v614 = vpop.xlane.xlu0 %613
  %v615 = vsel %vm76, %v449, 0.0
  %616 = vadd.xlane.f32.xlu0 %v615
  %v617 = vpop.xlane.xlu0 %616
  %v618 = vsel %vm76, %v450, 0.0
  %619 = vadd.xlane.f32.xlu0 %v618
  %v620 = vpop.xlane.xlu0 %619
  %v621 = vsel %vm76, %v451, 0.0
  %622 = vadd.xlane.f32.xlu0 %v621
  %v623 = vpop.xlane.xlu0 %622
  %v624 = vsel %vm76, %v452, 0.0
  %625 = vadd.xlane.f32.xlu0 %v624
  %v626 = vpop.xlane.xlu0 %625
  %v627 = vsel %vm76, %v453, 0.0
  %628 = vadd.xlane.f32.xlu0 %v627
  %v629 = vpop.xlane.xlu0 %628
  %v630 = vsel %vm76, %v454, 0.0
  %631 = vadd.xlane.f32.xlu0 %v630
  %v632 = vpop.xlane.xlu0 %631
  %v633 = vsel %vm76, %v455, 0.0
  %634 = vadd.xlane.f32.xlu0 %v633
  %v635 = vpop.xlane.xlu0 %634
  %v636 = vsel %vm76, %v456, 0.0
  %637 = vadd.xlane.f32.xlu0 %v636
  %v638 = vpop.xlane.xlu0 %637
  %v639 = vsel %vm76, %v457, 0.0
  %640 = vadd.xlane.f32.xlu0 %v639
  %v641 = vpop.xlane.xlu0 %640
  %v642 = vsel %vm76, %v458, 0.0
  %643 = vadd.xlane.f32.xlu0 %v642
  %v644 = vpop.xlane.xlu0 %643
  %v645 = vsel %vm76, %v459, 0.0
  %646 = vadd.xlane.f32.xlu0 %v645
  %v647 = vpop.xlane.xlu0 %646
  %v648 = vsel %vm76, %v460, 0.0
  %649 = vadd.xlane.f32.xlu0 %v648
  %v650 = vpop.xlane.xlu0 %649
  %v651 = vsel %vm76, %v461, 0.0
  %652 = vadd.xlane.f32.xlu0 %v651
  %v653 = vpop.xlane.xlu0 %652
  %v654 = vmul.f32 %v464, %v269
  %v655 = vmul.f32 %v467, %v269
  %v656 = vmul.f32 %v470, %v269
  %v657 = vmul.f32 %v473, %v269
  %v658 = vmul.f32 %v476, %v269
  %v659 = vmul.f32 %v479, %v269
  %v660 = vmul.f32 %v482, %v269
  %v661 = vmul.f32 %v485, %v269
  %v662 = vmul.f32 %v488, %v269
  %v663 = vmul.f32 %v491, %v269
  %v664 = vmul.f32 %v494, %v269
  %v665 = vmul.f32 %v497, %v269
  %v666 = vmul.f32 %v500, %v269
  %v667 = vmul.f32 %v503, %v269
  %v668 = vmul.f32 %v506, %v269
  %v669 = vmul.f32 %v509, %v269
  %v670 = vmul.f32 %v512, %v269
  %v671 = vmul.f32 %v515, %v269
  %v672 = vmul.f32 %v518, %v269
  %v673 = vmul.f32 %v521, %v269
  %v674 = vmul.f32 %v524, %v269
  %v675 = vmul.f32 %v527, %v269
  %v676 = vmul.f32 %v530, %v269
  %v677 = vmul.f32 %v533, %v269
  %v678 = vmul.f32 %v536, %v269
  %v679 = vmul.f32 %v539, %v269
  %v680 = vmul.f32 %v542, %v269
  %v681 = vmul.f32 %v545, %v269
  %v682 = vmul.f32 %v548, %v269
  %v683 = vmul.f32 %v551, %v269
  %v684 = vmul.f32 %v554, %v269
  %v685 = vmul.f32 %v557, %v269
  %v686 = vmul.f32 %v560, %v269
  %v687 = vmul.f32 %v563, %v269
  %v688 = vmul.f32 %v566, %v269
  %v689 = vmul.f32 %v569, %v269
  %v690 = vmul.f32 %v572, %v269
  %v691 = vmul.f32 %v575, %v269
  %v692 = vmul.f32 %v578, %v269
  %v693 = vmul.f32 %v581, %v269
  %v694 = vmul.f32 %v584, %v269
  %v695 = vmul.f32 %v587, %v269
  %v696 = vmul.f32 %v590, %v269
  %v697 = vmul.f32 %v593, %v269
  %v698 = vmul.f32 %v596, %v269
  %v699 = vmul.f32 %v599, %v269
  %v700 = vmul.f32 %v602, %v269
  %v701 = vmul.f32 %v605, %v269
  %v702 = vmul.f32 %v608, %v269
  %v703 = vmul.f32 %v611, %v269
  %v704 = vmul.f32 %v614, %v269
  %v705 = vmul.f32 %v617, %v269
  %v706 = vmul.f32 %v620, %v269
  %v707 = vmul.f32 %v623, %v269
  %v708 = vmul.f32 %v626, %v269
  %v709 = vmul.f32 %v629, %v269
  %v710 = vmul.f32 %v632, %v269
  %v711 = vmul.f32 %v635, %v269
  %v712 = vmul.f32 %v638, %v269
  %v713 = vmul.f32 %v641, %v269
  %v714 = vmul.f32 %v644, %v269
  %v715 = vmul.f32 %v647, %v269
  %v716 = vmul.f32 %v650, %v269
  %v717 = vmul.f32 %v653, %v269
  %v718 = vadd.f32 %v654, 1e-05
  %v719 = vadd.f32 %v655, 1e-05
  %v720 = vadd.f32 %v656, 1e-05
  %v721 = vadd.f32 %v657, 1e-05
  %v722 = vadd.f32 %v658, 1e-05
  %v723 = vadd.f32 %v659, 1e-05
  %v724 = vadd.f32 %v660, 1e-05
  %v725 = vadd.f32 %v661, 1e-05
  %v726 = vadd.f32 %v662, 1e-05
  %v727 = vadd.f32 %v663, 1e-05
  %v728 = vadd.f32 %v664, 1e-05
  %v729 = vadd.f32 %v665, 1e-05
  %v730 = vadd.f32 %v666, 1e-05
  %v731 = vadd.f32 %v667, 1e-05
  %v732 = vadd.f32 %v668, 1e-05
  %v733 = vadd.f32 %v669, 1e-05
  %v734 = vadd.f32 %v670, 1e-05
  %v735 = vadd.f32 %v671, 1e-05
  %v736 = vadd.f32 %v672, 1e-05
  %v737 = vadd.f32 %v673, 1e-05
  %v738 = vadd.f32 %v674, 1e-05
  %v739 = vadd.f32 %v675, 1e-05
  %v740 = vadd.f32 %v676, 1e-05
  %v741 = vadd.f32 %v677, 1e-05
  %v742 = vadd.f32 %v678, 1e-05
  %v743 = vadd.f32 %v679, 1e-05
  %v744 = vadd.f32 %v680, 1e-05
  %v745 = vadd.f32 %v681, 1e-05
  %v746 = vadd.f32 %v682, 1e-05
  %v747 = vadd.f32 %v683, 1e-05
  %v748 = vadd.f32 %v684, 1e-05
  %v749 = vadd.f32 %v685, 1e-05
  %v750 = vadd.f32 %v686, 1e-05
  %v751 = vadd.f32 %v687, 1e-05
  %v752 = vadd.f32 %v688, 1e-05
  %v753 = vadd.f32 %v689, 1e-05
  %v754 = vadd.f32 %v690, 1e-05
  %v755 = vadd.f32 %v691, 1e-05
  %v756 = vadd.f32 %v692, 1e-05
  %v757 = vadd.f32 %v693, 1e-05
  %v758 = vadd.f32 %v694, 1e-05
  %v759 = vadd.f32 %v695, 1e-05
  %v760 = vadd.f32 %v696, 1e-05
  %v761 = vadd.f32 %v697, 1e-05
  %v762 = vadd.f32 %v698, 1e-05
  %v763 = vadd.f32 %v699, 1e-05
  %v764 = vadd.f32 %v700, 1e-05
  %v765 = vadd.f32 %v701, 1e-05
  %v766 = vadd.f32 %v702, 1e-05
  %v767 = vadd.f32 %v703, 1e-05
  %v768 = vadd.f32 %v704, 1e-05
  %v769 = vadd.f32 %v705, 1e-05
  %v770 = vadd.f32 %v706, 1e-05
  %v771 = vadd.f32 %v707, 1e-05
  %v772 = vadd.f32 %v708, 1e-05
  %v773 = vadd.f32 %v709, 1e-05
  %v774 = vadd.f32 %v710, 1e-05
  %v775 = vadd.f32 %v711, 1e-05
  %v776 = vadd.f32 %v712, 1e-05
  %v777 = vadd.f32 %v713, 1e-05
  %v778 = vadd.f32 %v714, 1e-05
  %v779 = vadd.f32 %v715, 1e-05
  %v780 = vadd.f32 %v716, 1e-05
  %v781 = vadd.f32 %v717, 1e-05
  %v782 = vrsqrt.pop %v718
  %v783 = vrsqrt.pop %v719
  %v784 = vrsqrt.pop %v720
  %v785 = vrsqrt.pop %v721
  %v786 = vrsqrt.pop %v722
  %v787 = vrsqrt.pop %v723
  %v788 = vrsqrt.pop %v724
  %v789 = vrsqrt.pop %v725
  %v790 = vrsqrt.pop %v726
  %v791 = vrsqrt.pop %v727
  %v792 = vrsqrt.pop %v728
  %v793 = vrsqrt.pop %v729
  %v794 = vrsqrt.pop %v730
  %v795 = vrsqrt.pop %v731
  %v796 = vrsqrt.pop %v732
  %v797 = vrsqrt.pop %v733
  %v798 = vrsqrt.pop %v734
  %v799 = vrsqrt.pop %v735
  %v800 = vrsqrt.pop %v736
  %v801 = vrsqrt.pop %v737
  %v802 = vrsqrt.pop %v738
  %v803 = vrsqrt.pop %v739
  %v804 = vrsqrt.pop %v740
  %v805 = vrsqrt.pop %v741
  %v806 = vrsqrt.pop %v742
  %v807 = vrsqrt.pop %v743
  %v808 = vrsqrt.pop %v744
  %v809 = vrsqrt.pop %v745
  %v810 = vrsqrt.pop %v746
  %v811 = vrsqrt.pop %v747
  %v812 = vrsqrt.pop %v748
  %v813 = vrsqrt.pop %v749
  %v814 = vrsqrt.pop %v750
  %v815 = vrsqrt.pop %v751
  %v816 = vrsqrt.pop %v752
  %v817 = vrsqrt.pop %v753
  %v818 = vrsqrt.pop %v754
  %v819 = vrsqrt.pop %v755
  %v820 = vrsqrt.pop %v756
  %v821 = vrsqrt.pop %v757
  %v822 = vrsqrt.pop %v758
  %v823 = vrsqrt.pop %v759
  %v824 = vrsqrt.pop %v760
  %v825 = vrsqrt.pop %v761
  %v826 = vrsqrt.pop %v762
  %v827 = vrsqrt.pop %v763
  %v828 = vrsqrt.pop %v764
  %v829 = vrsqrt.pop %v765
  %v830 = vrsqrt.pop %v766
  %v831 = vrsqrt.pop %v767
  %v832 = vrsqrt.pop %v768
  %v833 = vrsqrt.pop %v769
  %v834 = vrsqrt.pop %v770
  %v835 = vrsqrt.pop %v771
  %v836 = vrsqrt.pop %v772
  %v837 = vrsqrt.pop %v773
  %v838 = vrsqrt.pop %v774
  %v839 = vrsqrt.pop %v775
  %v840 = vrsqrt.pop %v776
  %v841 = vrsqrt.pop %v777
  %v842 = vrsqrt.pop %v778
  %v843 = vrsqrt.pop %v779
  %v844 = vrsqrt.pop %v780
  %v845 = vrsqrt.pop %v781
  %v846 = vmul.f32 %v11, %v782
  %v847 = vmul.f32 %v12, %v783
  %v848 = vmul.f32 %v13, %v784
  %v849 = vmul.f32 %v14, %v785
  %v850 = vmul.f32 %v15, %v786
  %v851 = vmul.f32 %v16, %v787
  %v852 = vmul.f32 %v17, %v788
  %v853 = vmul.f32 %v18, %v789
  %v854 = vmul.f32 %v19, %v790
  %v855 = vmul.f32 %v20, %v791
  %v856 = vmul.f32 %v21, %v792
  %v857 = vmul.f32 %v22, %v793
  %v858 = vmul.f32 %v23, %v794
  %v859 = vmul.f32 %v24, %v795
  %v860 = vmul.f32 %v25, %v796
  %v861 = vmul.f32 %v26, %v797
  %v862 = vmul.f32 %v27, %v798
  %v863 = vmul.f32 %v28, %v799
  %v864 = vmul.f32 %v29, %v800
  %v865 = vmul.f32 %v30, %v801
  %v866 = vmul.f32 %v31, %v802
  %v867 = vmul.f32 %v32, %v803
  %v868 = vmul.f32 %v33, %v804
  %v869 = vmul.f32 %v34, %v805
  %v870 = vmul.f32 %v35, %v806
  %v871 = vmul.f32 %v36, %v807
  %v872 = vmul.f32 %v37, %v808
  %v873 = vmul.f32 %v38, %v809
  %v874 = vmul.f32 %v39, %v810
  %v875 = vmul.f32 %v40, %v811
  %v876 = vmul.f32 %v41, %v812
  %v877 = vmul.f32 %v42, %v813
  %v878 = vmul.f32 %v43, %v814
  %v879 = vmul.f32 %v44, %v815
  %v880 = vmul.f32 %v45, %v816
  %v881 = vmul.f32 %v46, %v817
  %v882 = vmul.f32 %v47, %v818
  %v883 = vmul.f32 %v48, %v819
  %v884 = vmul.f32 %v49, %v820
  %v885 = vmul.f32 %v50, %v821
  %v886 = vmul.f32 %v51, %v822
  %v887 = vmul.f32 %v52, %v823
  %v888 = vmul.f32 %v53, %v824
  %v889 = vmul.f32 %v54, %v825
  %v890 = vmul.f32 %v55, %v826
  %v891 = vmul.f32 %v56, %v827
  %v892 = vmul.f32 %v57, %v828
  %v893 = vmul.f32 %v58, %v829
  %v894 = vmul.f32 %v59, %v830
  %v895 = vmul.f32 %v60, %v831
  %v896 = vmul.f32 %v61, %v832
  %v897 = vmul.f32 %v62, %v833
  %v898 = vmul.f32 %v63, %v834
  %v899 = vmul.f32 %v64, %v835
  %v900 = vmul.f32 %v65, %v836
  %v901 = vmul.f32 %v66, %v837
  %v902 = vmul.f32 %v67, %v838
  %v903 = vmul.f32 %v68, %v839
  %v904 = vmul.f32 %v69, %v840
  %v905 = vmul.f32 %v70, %v841
  %v906 = vmul.f32 %v71, %v842
  %v907 = vmul.f32 %v72, %v843
  %v908 = vmul.f32 %v73, %v844
  %v909 = vmul.f32 %v74, %v845
  %v911 = vlaneseq
  %v912 = vshrl.u32 %v911, 7
  %v913 = vsub.s32 0, %v912
  %v914 = vrot.slane %v75, %v913
  %v916 = vmul.f32 %v846, %v914
  %v917 = vmul.f32 %v847, %v914
  %v918 = vmul.f32 %v848, %v914
  %v919 = vmul.f32 %v849, %v914
  %v920 = vmul.f32 %v850, %v914
  %v921 = vmul.f32 %v851, %v914
  %v922 = vmul.f32 %v852, %v914
  %v923 = vmul.f32 %v853, %v914
  %v924 = vmul.f32 %v854, %v914
  %v925 = vmul.f32 %v855, %v914
  %v926 = vmul.f32 %v856, %v914
  %v927 = vmul.f32 %v857, %v914
  %v928 = vmul.f32 %v858, %v914
  %v929 = vmul.f32 %v859, %v914
  %v930 = vmul.f32 %v860, %v914
  %v931 = vmul.f32 %v861, %v914
  %v932 = vmul.f32 %v862, %v914
  %v933 = vmul.f32 %v863, %v914
  %v934 = vmul.f32 %v864, %v914
  %v935 = vmul.f32 %v865, %v914
  %v936 = vmul.f32 %v866, %v914
  %v937 = vmul.f32 %v867, %v914
  %v938 = vmul.f32 %v868, %v914
  %v939 = vmul.f32 %v869, %v914
  %v940 = vmul.f32 %v870, %v914
  %v941 = vmul.f32 %v871, %v914
  %v942 = vmul.f32 %v872, %v914
  %v943 = vmul.f32 %v873, %v914
  %v944 = vmul.f32 %v874, %v914
  %v945 = vmul.f32 %v875, %v914
  %v946 = vmul.f32 %v876, %v914
  %v947 = vmul.f32 %v877, %v914
  %v948 = vmul.f32 %v878, %v914
  %v949 = vmul.f32 %v879, %v914
  %v950 = vmul.f32 %v880, %v914
  %v951 = vmul.f32 %v881, %v914
  %v952 = vmul.f32 %v882, %v914
  %v953 = vmul.f32 %v883, %v914
  %v954 = vmul.f32 %v884, %v914
  %v955 = vmul.f32 %v885, %v914
  %v956 = vmul.f32 %v886, %v914
  %v957 = vmul.f32 %v887, %v914
  %v958 = vmul.f32 %v888, %v914
  %v959 = vmul.f32 %v889, %v914
  %v960 = vmul.f32 %v890, %v914
  %v961 = vmul.f32 %v891, %v914
  %v962 = vmul.f32 %v892, %v914
  %v963 = vmul.f32 %v893, %v914
  %v964 = vmul.f32 %v894, %v914
  %v965 = vmul.f32 %v895, %v914
  %v966 = vmul.f32 %v896, %v914
  %v967 = vmul.f32 %v897, %v914
  %v968 = vmul.f32 %v898, %v914
  %v969 = vmul.f32 %v899, %v914
  %v970 = vmul.f32 %v900, %v914
  %v971 = vmul.f32 %v901, %v914
  %v972 = vmul.f32 %v902, %v914
  %v973 = vmul.f32 %v903, %v914
  %v974 = vmul.f32 %v904, %v914
  %v975 = vmul.f32 %v905, %v914
  %v976 = vmul.f32 %v906, %v914
  %v977 = vmul.f32 %v907, %v914
  %v978 = vmul.f32 %v908, %v914
  %v979 = vmul.f32 %v909, %v914
  %980 = vst.msk [vmem:[%s2] sm:$0xff] %vm76, %v916
  %981 = vst.msk [vmem:[%s2 + $0x8] sm:$0xff] %vm76, %v917
  %982 = vst.msk [vmem:[%s2 + $0x10] sm:$0xff] %vm76, %v918
  %983 = vst.msk [vmem:[%s2 + $0x18] sm:$0xff] %vm76, %v919
  %984 = vst.msk [vmem:[%s2 + $0x20] sm:$0xff] %vm76, %v920
  %985 = vst.msk [vmem:[%s2 + $0x28] sm:$0xff] %vm76, %v921
  %986 = vst.msk [vmem:[%s2 + $0x30] sm:$0xff] %vm76, %v922
  %987 = vst.msk [vmem:[%s2 + $0x38] sm:$0xff] %vm76, %v923
  %988 = vst.msk [vmem:[%s2 + $0x40] sm:$0xff] %vm76, %v924
  %989 = vst.msk [vmem:[%s2 + $0x48] sm:$0xff] %vm76, %v925
  %990 = vst.msk [vmem:[%s2 + $0x50] sm:$0xff] %vm76, %v926
  %991 = vst.msk [vmem:[%s2 + $0x58] sm:$0xff] %vm76, %v927
  %992 = vst.msk [vmem:[%s2 + $0x60] sm:$0xff] %vm76, %v928
  %993 = vst.msk [vmem:[%s2 + $0x68] sm:$0xff] %vm76, %v929
  %994 = vst.msk [vmem:[%s2 + $0x70] sm:$0xff] %vm76, %v930
  %995 = vst.msk [vmem:[%s2 + $0x78] sm:$0xff] %vm76, %v931
  %996 = vst.msk [vmem:[%s2 + $0x80] sm:$0xff] %vm76, %v932
  %997 = vst.msk [vmem:[%s2 + $0x88] sm:$0xff] %vm76, %v933
  %998 = vst.msk [vmem:[%s2 + $0x90] sm:$0xff] %vm76, %v934
  %999 = vst.msk [vmem:[%s2 + $0x98] sm:$0xff] %vm76, %v935
  %1000 = vst.msk [vmem:[%s2 + $0xa0] sm:$0xff] %vm76, %v936
  %1001 = vst.msk [vmem:[%s2 + $0xa8] sm:$0xff] %vm76, %v937
  %1002 = vst.msk [vmem:[%s2 + $0xb0] sm:$0xff] %vm76, %v938
  %1003 = vst.msk [vmem:[%s2 + $0xb8] sm:$0xff] %vm76, %v939
  %1004 = vst.msk [vmem:[%s2 + $0xc0] sm:$0xff] %vm76, %v940
  %1005 = vst.msk [vmem:[%s2 + $0xc8] sm:$0xff] %vm76, %v941
  %1006 = vst.msk [vmem:[%s2 + $0xd0] sm:$0xff] %vm76, %v942
  %1007 = vst.msk [vmem:[%s2 + $0xd8] sm:$0xff] %vm76, %v943
  %1008 = vst.msk [vmem:[%s2 + $0xe0] sm:$0xff] %vm76, %v944
  %1009 = vst.msk [vmem:[%s2 + $0xe8] sm:$0xff] %vm76, %v945
  %1010 = vst.msk [vmem:[%s2 + $0xf0] sm:$0xff] %vm76, %v946
  %1011 = vst.msk [vmem:[%s2 + $0xf8] sm:$0xff] %vm76, %v947
  %1012 = vst.msk [vmem:[%s2 + $0x100] sm:$0xff] %vm76, %v948
  %1013 = vst.msk [vmem:[%s2 + $0x108] sm:$0xff] %vm76, %v949
  %1014 = vst.msk [vmem:[%s2 + $0x110] sm:$0xff] %vm76, %v950
  %1015 = vst.msk [vmem:[%s2 + $0x118] sm:$0xff] %vm76, %v951
  %1016 = vst.msk [vmem:[%s2 + $0x120] sm:$0xff] %vm76, %v952
  %1017 = vst.msk [vmem:[%s2 + $0x128] sm:$0xff] %vm76, %v953
  %1018 = vst.msk [vmem:[%s2 + $0x130] sm:$0xff] %vm76, %v954
  %1019 = vst.msk [vmem:[%s2 + $0x138] sm:$0xff] %vm76, %v955
  %1020 = vst.msk [vmem:[%s2 + $0x140] sm:$0xff] %vm76, %v956
  %1021 = vst.msk [vmem:[%s2 + $0x148] sm:$0xff] %vm76, %v957
  %1022 = vst.msk [vmem:[%s2 + $0x150] sm:$0xff] %vm76, %v958
  %1023 = vst.msk [vmem:[%s2 + $0x158] sm:$0xff] %vm76, %v959
  %1024 = vst.msk [vmem:[%s2 + $0x160] sm:$0xff] %vm76, %v960
  %1025 = vst.msk [vmem:[%s2 + $0x168] sm:$0xff] %vm76, %v961
  %1026 = vst.msk [vmem:[%s2 + $0x170] sm:$0xff] %vm76, %v962
  %1027 = vst.msk [vmem:[%s2 + $0x178] sm:$0xff] %vm76, %v963
  %1028 = vst.msk [vmem:[%s2 + $0x180] sm:$0xff] %vm76, %v964
  %1029 = vst.msk [vmem:[%s2 + $0x188] sm:$0xff] %vm76, %v965
  %1030 = vst.msk [vmem:[%s2 + $0x190] sm:$0xff] %vm76, %v966
  %1031 = vst.msk [vmem:[%s2 + $0x198] sm:$0xff] %vm76, %v967
  %1032 = vst.msk [vmem:[%s2 + $0x1a0] sm:$0xff] %vm76, %v968
  %1033 = vst.msk [vmem:[%s2 + $0x1a8] sm:$0xff] %vm76, %v969
  %1034 = vst.msk [vmem:[%s2 + $0x1b0] sm:$0xff] %vm76, %v970
  %1035 = vst.msk [vmem:[%s2 + $0x1b8] sm:$0xff] %vm76, %v971
  %1036 = vst.msk [vmem:[%s2 + $0x1c0] sm:$0xff] %vm76, %v972
  %1037 = vst.msk [vmem:[%s2 + $0x1c8] sm:$0xff] %vm76, %v973
  %1038 = vst.msk [vmem:[%s2 + $0x1d0] sm:$0xff] %vm76, %v974
  %1039 = vst.msk [vmem:[%s2 + $0x1d8] sm:$0xff] %vm76, %v975
  %1040 = vst.msk [vmem:[%s2 + $0x1e0] sm:$0xff] %vm76, %v976
  %1041 = vst.msk [vmem:[%s2 + $0x1e8] sm:$0xff] %vm76, %v977
  %1042 = vst.msk [vmem:[%s2 + $0x1f0] sm:$0xff] %vm76, %v978
  %1043 = vst.msk [vmem:[%s2 + $0x1f8] sm:$0xff] %vm76, %v979
  // Predicated region
  $region10: #{tpu_custom_call.1} parent=0 // pred_check
    _
  $region11: #{tpu_custom_call.1} parent=0 // pred_check_branch
    %1045 = sbr.rel (0) target = $region13
  $region12: #{tpu_custom_call.1} parent=0 // pred_region
    _
  $region13: #{tpu_custom_call.1} parent=0 // pred_fallthru
    _
  // Predicated region
  $region14: #{tpu_custom_call.1} parent=0 // pred_check
    _
  $region15: #{tpu_custom_call.1} parent=0 // pred_check_branch
    %1047 = sbr.rel (0) target = $region17
  $region16: #{tpu_custom_call.1} parent=0 // pred_region
    _
  $region17: #{tpu_custom_call.1} parent=0 // pred_fallthru
    _

</llo_original>
